<compile_context>
chip_gen: v7x
topology: tpu7x:2x2x1
jax: 0.10.0
libtpu: 0.0.40
codegen_flags: <defaults>
</compile_context>

<pallas_src>
import functools

import jax
import jax.numpy as jnp
from jax.experimental import pallas as pl
from jax.experimental.pallas import tpu as pltpu


def _round_up(a, b):
    return ((a + b - 1) // b) * b


def mlp_kernel(out_dim, x_ref, w1_ref, b1_ref, w2_ref, b2_ref,
               w3_ref, b3_ref, w4_ref, b4_ref, o_ref):
    # bf16 operands into the MXU, f32 accumulation, f32 elementwise.
    x = x_ref[...].astype(jnp.bfloat16)

    # layer1 + ReLU
    h = jnp.dot(x, w1_ref[...], preferred_element_type=jnp.float32) + b1_ref[...]
    h = jnp.maximum(h, 0.0)

    # layer2 + sigmoid
    h = jnp.dot(h.astype(jnp.bfloat16), w2_ref[...],
                preferred_element_type=jnp.float32) + b2_ref[...]
    h = jax.nn.sigmoid(h)

    # layer3 + sigmoid
    h = jnp.dot(h.astype(jnp.bfloat16), w3_ref[...],
                preferred_element_type=jnp.float32) + b3_ref[...]
    h = jax.nn.sigmoid(h)

    # out + softmax over the feature axis (PyTorch dim=1).
    # w4/b4 are zero-padded to a lane-dense width; mask padded lanes to -inf
    # so they contribute exp(-inf)=0 to the softmax.
    logits = jnp.dot(h.astype(jnp.bfloat16), w4_ref[...],
                     preferred_element_type=jnp.float32) + b4_ref[...]
    lane = jax.lax.broadcasted_iota(jnp.int32, logits.shape, dimension=1)
    logits = jnp.where(lane < out_dim, logits, -jnp.inf)

    m = jnp.max(logits, axis=1, keepdims=True)
    e = jnp.exp(logits - m)
    denom = jnp.sum(e, axis=1, keepdims=True)
    o_ref[...] = (e * pl.reciprocal(denom, approx=True)).astype(o_ref.dtype)


def multiclass_simple_classification(x, params, *, tile_b=512):
    """x: [B, input_dim] float32. params: dict of bf16 weights / f32 biases."""
    B, in_dim = x.shape
    l1 = params["w1"].shape[1]
    l2 = params["w2"].shape[1]
    l3 = params["w3"].shape[1]
    out_dim = params["w4"].shape[1]

    # Lane-dense output width (multiple of 128 lanes).
    out_pad = _round_up(max(out_dim, 128), 128)
    w4 = jnp.pad(params["w4"], ((0, 0), (0, out_pad - out_dim)))
    b4 = jnp.pad(params["b4"], ((0, 0), (0, out_pad - out_dim)))

    # Batch tile: sublane-aligned; pad B to a multiple of the tile so the
    # grid covers it exactly.  (Padded rows are sliced off at the end.)
    tb = min(tile_b, _round_up(B, 8))
    b_pad = _round_up(B, tb)
    if b_pad != B:
        x = jnp.pad(x, ((0, b_pad - B), (0, 0)))
    grid = (b_pad // tb,)

    # Advisory cost estimate for XLA's scheduler.
    flops = 2 * b_pad * (in_dim * l1 + l1 * l2 + l2 * l3 + l3 * out_pad)
    transcendentals = b_pad * (l2 + l3 + out_pad + 1)
    bytes_accessed = (
        x.size * x.dtype.itemsize + b_pad * out_pad * 4
        + sum(int(params[k].size * params[k].dtype.itemsize)
              for k in ("w1", "b1", "w2", "b2", "w3", "b3"))
        + int(w4.size * w4.dtype.itemsize) + int(b4.size * b4.dtype.itemsize))

    resident = lambda arr: pl.BlockSpec(arr.shape, lambda i: (0, 0))

    out_padded = pl.pallas_call(
        functools.partial(mlp_kernel, out_dim),
        out_shape=jax.ShapeDtypeStruct((b_pad, out_pad), jnp.float32),
        grid=grid,
        in_specs=[
            pl.BlockSpec((tb, in_dim), lambda i: (i, 0)),   # x: tiled over batch
            resident(params["w1"]), resident(params["b1"]),
            resident(params["w2"]), resident(params["b2"]),
            resident(params["w3"]), resident(params["b3"]),
            resident(w4), resident(b4),
        ],
        out_specs=pl.BlockSpec((tb, out_pad), lambda i: (i, 0)),
        compiler_params=pltpu.CompilerParams(
            dimension_semantics=("parallel",),
            vmem_limit_bytes=32 * 1024 * 1024),
        cost_estimate=pl.CostEstimate(
            flops=flops,
            transcendentals=transcendentals,
            bytes_accessed=bytes_accessed),
    )(x,
      params["w1"], params["b1"],
      params["w2"], params["b2"],
      params["w3"], params["b3"],
      w4, b4)

    return out_padded[:B, :out_dim]


def init_params(key, input_dim, output_dim, l1=256, l2=128, l3=64):
    """Deterministic init mimicking nn.Linear uniform(-1/sqrt(fan_in), 1/sqrt(fan_in)).

    Weights stored as [in, out] (transposed from nn.Linear) in bf16 (MXU
    operands); biases kept f32 and 2-D (1, out) for clean vreg broadcast.
    """
    dims = [(input_dim, l1), (l1, l2), (l2, l3), (l3, output_dim)]
    params = {}
    for i, (fan_in, fan_out) in enumerate(dims, start=1):
        key, kw, kb = jax.random.split(key, 3)
        bound = 1.0 / (fan_in ** 0.5)
        params[f"w{i}"] = jax.random.uniform(
            kw, (fan_in, fan_out), jnp.float32, -bound, bound).astype(jnp.bfloat16)
        params[f"b{i}"] = jax.random.uniform(
            kb, (1, fan_out), jnp.float32, -bound, bound)
    return params


def _reference(x, params):
    """Pure-JAX reference with the same bf16-operand / f32-accumulate math."""
    def lin(h, w, b):
        return jnp.dot(h.astype(jnp.bfloat16), w,
                       preferred_element_type=jnp.float32) + b
    h = jnp.maximum(lin(x, params["w1"], params["b1"]), 0.0)
    h = jax.nn.sigmoid(lin(h, params["w2"], params["b2"]))
    h = jax.nn.sigmoid(lin(h, params["w3"], params["b3"]))
    return jax.nn.softmax(lin(h, params["w4"], params["b4"]), axis=1)


if __name__ == "__main__":
    key = jax.random.PRNGKey(0)
    k_params, k_x = jax.random.split(key)

    batch, input_dim, output_dim = 8, 32, 10
    params = init_params(k_params, input_dim, output_dim)
    x = jax.random.normal(k_x, (batch, input_dim), jnp.float32)

    out = multiclass_simple_classification(x, params)
    out = jax.block_until_ready(out)

    assert out.shape == (batch, output_dim)
    # softmax rows sum to 1 (approx reciprocal => slightly loose tolerance)
    row_sums = jnp.sum(out, axis=1)
    assert jnp.allclose(row_sums, jnp.ones_like(row_sums), atol=2e-3)
    # match a pure-JAX reference of the same computation
    ref = _reference(x, params)
    assert jnp.allclose(out, ref, atol=1e-2)

    print("KERNEL_OK")
</pallas_src>

<mosaic_0001>
module attributes {stable_mosaic.version = 11 : i64} {
  func.func @mlp_kernel(%arg0: i32, %arg1: memref<8x32xf32, #tpu.memory_space<vmem>>, %arg2: memref<32x256xbf16, #tpu.memory_space<vmem>>, %arg3: memref<1x256xf32, #tpu.memory_space<vmem>>, %arg4: memref<256x128xbf16, #tpu.memory_space<vmem>>, %arg5: memref<1x128xf32, #tpu.memory_space<vmem>>, %arg6: memref<128x64xbf16, #tpu.memory_space<vmem>>, %arg7: memref<1x64xf32, #tpu.memory_space<vmem>>, %arg8: memref<64x128xbf16, #tpu.memory_space<vmem>>, %arg9: memref<1x128xf32, #tpu.memory_space<vmem>>, %arg10: memref<8x128xf32, #tpu.memory_space<vmem>>) attributes {dimension_semantics = [#tpu.dimension_semantics<parallel>], iteration_bounds = array<i64: 1>, scalar_prefetch = 0 : i64, scratch_operands = 0 : i64, tpu.core_type = #tpu.core_type<tc>, window_params = [{transform_indices = @transform_0, window_bounds = array<i64: 8, 32>}, {pipeline_mode = #tpu.pipeline_mode<synchronous>, transform_indices = @transform_1, window_bounds = array<i64: 32, 256>}, {pipeline_mode = #tpu.pipeline_mode<synchronous>, transform_indices = @transform_2, window_bounds = array<i64: 1, 256>}, {pipeline_mode = #tpu.pipeline_mode<synchronous>, transform_indices = @transform_3, window_bounds = array<i64: 256, 128>}, {pipeline_mode = #tpu.pipeline_mode<synchronous>, transform_indices = @transform_4, window_bounds = array<i64: 1, 128>}, {pipeline_mode = #tpu.pipeline_mode<synchronous>, transform_indices = @transform_5, window_bounds = array<i64: 128, 64>}, {pipeline_mode = #tpu.pipeline_mode<synchronous>, transform_indices = @transform_6, window_bounds = array<i64: 1, 64>}, {pipeline_mode = #tpu.pipeline_mode<synchronous>, transform_indices = @transform_7, window_bounds = array<i64: 64, 128>}, {pipeline_mode = #tpu.pipeline_mode<synchronous>, transform_indices = @transform_8, window_bounds = array<i64: 1, 128>}, {transform_indices = @transform_9, window_bounds = array<i64: 8, 128>}]} {
    %c0 = arith.constant 0 : index
    %c0_0 = arith.constant 0 : index
    %0 = vector.load %arg1[%c0, %c0_0] : memref<8x32xf32, #tpu.memory_space<vmem>>, vector<8x32xf32>
    %1 = arith.truncf %0 : vector<8x32xf32> to vector<8x32xbf16>
    %c0_1 = arith.constant 0 : index
    %c0_2 = arith.constant 0 : index
    %2 = vector.load %arg2[%c0_1, %c0_2] : memref<32x256xbf16, #tpu.memory_space<vmem>>, vector<32x256xbf16>
    %cst = arith.constant dense<0.000000e+00> : vector<8x256xf32>
    %3 = tpu.matmul %1, %2, %cst {dimension_numbers = #tpu.dot_dimension_numbers<[1], [0], [0], [1], [0, 0, 1, 1], [], []>} : vector<8x32xbf16>, vector<32x256xbf16>, vector<8x256xf32> -> vector<8x256xf32>
    %c0_3 = arith.constant 0 : index
    %c0_4 = arith.constant 0 : index
    %4 = vector.load %arg3[%c0_3, %c0_4] : memref<1x256xf32, #tpu.memory_space<vmem>>, vector<1x256xf32>
    %5 = vector.broadcast %4 : vector<1x256xf32> to vector<8x256xf32>
    %6 = arith.addf %3, %5 : vector<8x256xf32>
    %cst_5 = arith.constant 0.000000e+00 : f32
    %7 = vector.broadcast %cst_5 : f32 to vector<8x256xf32>
    %8 = arith.maximumf %6, %7 : vector<8x256xf32>
    %9 = arith.truncf %8 : vector<8x256xf32> to vector<8x256xbf16>
    %c0_6 = arith.constant 0 : index
    %c0_7 = arith.constant 0 : index
    %10 = vector.load %arg4[%c0_6, %c0_7] : memref<256x128xbf16, #tpu.memory_space<vmem>>, vector<256x128xbf16>
    %cst_8 = arith.constant dense<0.000000e+00> : vector<8x128xf32>
    %11 = tpu.matmul %9, %10, %cst_8 {dimension_numbers = #tpu.dot_dimension_numbers<[1], [0], [0], [1], [0, 0, 1, 1], [], []>} : vector<8x256xbf16>, vector<256x128xbf16>, vector<8x128xf32> -> vector<8x128xf32>
    %c0_9 = arith.constant 0 : index
    %c0_10 = arith.constant 0 : index
    %12 = vector.load %arg5[%c0_9, %c0_10] : memref<1x128xf32, #tpu.memory_space<vmem>>, vector<1x128xf32>
    %13 = vector.broadcast %12 : vector<1x128xf32> to vector<8x128xf32>
    %14 = arith.addf %11, %13 : vector<8x128xf32>
    %15 = arith.negf %14 : vector<8x128xf32>
    %16 = math.exp %15 : vector<8x128xf32>
    %cst_11 = arith.constant 1.000000e+00 : f32
    %17 = vector.broadcast %cst_11 : f32 to vector<8x128xf32>
    %18 = arith.addf %17, %16 : vector<8x128xf32>
    %19 = arith.divf %17, %18 : vector<8x128xf32>
    %20 = arith.truncf %19 : vector<8x128xf32> to vector<8x128xbf16>
    %c0_12 = arith.constant 0 : index
    %c0_13 = arith.constant 0 : index
    %21 = vector.load %arg6[%c0_12, %c0_13] : memref<128x64xbf16, #tpu.memory_space<vmem>>, vector<128x64xbf16>
    %cst_14 = arith.constant dense<0.000000e+00> : vector<8x64xf32>
    %22 = tpu.matmul %20, %21, %cst_14 {dimension_numbers = #tpu.dot_dimension_numbers<[1], [0], [0], [1], [0, 0, 1, 1], [], []>} : vector<8x128xbf16>, vector<128x64xbf16>, vector<8x64xf32> -> vector<8x64xf32>
    %c0_15 = arith.constant 0 : index
    %c0_16 = arith.constant 0 : index
    %23 = vector.load %arg7[%c0_15, %c0_16] : memref<1x64xf32, #tpu.memory_space<vmem>>, vector<1x64xf32>
    %24 = vector.broadcast %23 : vector<1x64xf32> to vector<8x64xf32>
    %25 = arith.addf %22, %24 : vector<8x64xf32>
    %26 = arith.negf %25 : vector<8x64xf32>
    %27 = math.exp %26 : vector<8x64xf32>
    %cst_17 = arith.constant 1.000000e+00 : f32
    %28 = vector.broadcast %cst_17 : f32 to vector<8x64xf32>
    %29 = arith.addf %28, %27 : vector<8x64xf32>
    %30 = arith.divf %28, %29 : vector<8x64xf32>
    %31 = arith.truncf %30 : vector<8x64xf32> to vector<8x64xbf16>
    %c0_18 = arith.constant 0 : index
    %c0_19 = arith.constant 0 : index
    %32 = vector.load %arg8[%c0_18, %c0_19] : memref<64x128xbf16, #tpu.memory_space<vmem>>, vector<64x128xbf16>
    %cst_20 = arith.constant dense<0.000000e+00> : vector<8x128xf32>
    %33 = tpu.matmul %31, %32, %cst_20 {dimension_numbers = #tpu.dot_dimension_numbers<[1], [0], [0], [1], [0, 0, 1, 1], [], []>} : vector<8x64xbf16>, vector<64x128xbf16>, vector<8x128xf32> -> vector<8x128xf32>
    %c0_21 = arith.constant 0 : index
    %c0_22 = arith.constant 0 : index
    %34 = vector.load %arg9[%c0_21, %c0_22] : memref<1x128xf32, #tpu.memory_space<vmem>>, vector<1x128xf32>
    %35 = vector.broadcast %34 : vector<1x128xf32> to vector<8x128xf32>
    %36 = arith.addf %33, %35 : vector<8x128xf32>
    %37 = tpu.iota {dimensions = array<i32: 1>} : vector<8x128xi32>
    %c10_i32 = arith.constant 10 : i32
    %38 = vector.broadcast %c10_i32 : i32 to vector<8x128xi32>
    %39 = arith.cmpi slt, %37, %38 : vector<8x128xi32>
    %cst_23 = arith.constant 0xFF800000 : f32
    %40 = vector.broadcast %cst_23 : f32 to vector<8x128xf32>
    %41 = arith.select %39, %36, %40 : vector<8x128xi1>, vector<8x128xf32>
    %cst_24 = arith.constant dense<0xFF800000> : vector<8xf32>
    %42 = vector.multi_reduction <maximumf>, %41, %cst_24 [1] : vector<8x128xf32> to vector<8xf32>
    %43 = vector.shape_cast %42 : vector<8xf32> to vector<8x1xf32>
    %44 = vector.broadcast %43 : vector<8x1xf32> to vector<8x128xf32>
    %45 = arith.subf %41, %44 : vector<8x128xf32>
    %46 = math.exp %45 : vector<8x128xf32>
    %cst_25 = arith.constant dense<0.000000e+00> : vector<8xf32>
    %47 = vector.multi_reduction <add>, %46, %cst_25 [1] : vector<8x128xf32> to vector<8xf32>
    %48 = vector.shape_cast %47 : vector<8xf32> to vector<8x1xf32>
    %49 = tpu.reciprocal %48 {approx = true} : vector<8x1xf32> -> vector<8x1xf32>
    %50 = vector.broadcast %49 : vector<8x1xf32> to vector<8x128xf32>
    %51 = arith.mulf %46, %50 : vector<8x128xf32>
    %c0_26 = arith.constant 0 : index
    %c0_27 = arith.constant 0 : index
    %52 = vector.load %arg10[%c0_26, %c0_27] : memref<8x128xf32, #tpu.memory_space<vmem>>, vector<8x128xf32>
    tpu.vector_store %arg10[%c0_26, %c0_27], %51 {strides = array<i32>} : memref<8x128xf32, #tpu.memory_space<vmem>>, vector<8x128xf32>,
    return
  }
  func.func @transform_0(%arg0: i32) -> (i32, i32) {
    %c0_i32 = arith.constant 0 : i32
    %c0_i32_0 = arith.constant 0 : i32
    return %arg0, %c0_i32 : i32, i32
  }
  func.func @transform_1(%arg0: i32) -> (i32, i32) {
    %c0_i32 = arith.constant 0 : i32
    %c0_i32_0 = arith.constant 0 : i32
    %c0_i32_1 = arith.constant 0 : i32
    return %c0_i32, %c0_i32_0 : i32, i32
  }
  func.func @transform_2(%arg0: i32) -> (i32, i32) {
    %c0_i32 = arith.constant 0 : i32
    %c0_i32_0 = arith.constant 0 : i32
    %c0_i32_1 = arith.constant 0 : i32
    return %c0_i32, %c0_i32_0 : i32, i32
  }
  func.func @transform_3(%arg0: i32) -> (i32, i32) {
    %c0_i32 = arith.constant 0 : i32
    %c0_i32_0 = arith.constant 0 : i32
    %c0_i32_1 = arith.constant 0 : i32
    return %c0_i32, %c0_i32_0 : i32, i32
  }
  func.func @transform_4(%arg0: i32) -> (i32, i32) {
    %c0_i32 = arith.constant 0 : i32
    %c0_i32_0 = arith.constant 0 : i32
    %c0_i32_1 = arith.constant 0 : i32
    return %c0_i32, %c0_i32_0 : i32, i32
  }
  func.func @transform_5(%arg0: i32) -> (i32, i32) {
    %c0_i32 = arith.constant 0 : i32
    %c0_i32_0 = arith.constant 0 : i32
    %c0_i32_1 = arith.constant 0 : i32
    return %c0_i32, %c0_i32_0 : i32, i32
  }
  func.func @transform_6(%arg0: i32) -> (i32, i32) {
    %c0_i32 = arith.constant 0 : i32
    %c0_i32_0 = arith.constant 0 : i32
    %c0_i32_1 = arith.constant 0 : i32
    return %c0_i32, %c0_i32_0 : i32, i32
  }
  func.func @transform_7(%arg0: i32) -> (i32, i32) {
    %c0_i32 = arith.constant 0 : i32
    %c0_i32_0 = arith.constant 0 : i32
    %c0_i32_1 = arith.constant 0 : i32
    return %c0_i32, %c0_i32_0 : i32, i32
  }
  func.func @transform_8(%arg0: i32) -> (i32, i32) {
    %c0_i32 = arith.constant 0 : i32
    %c0_i32_0 = arith.constant 0 : i32
    %c0_i32_1 = arith.constant 0 : i32
    return %c0_i32, %c0_i32_0 : i32, i32
  }
  func.func @transform_9(%arg0: i32) -> (i32, i32) {
    %c0_i32 = arith.constant 0 : i32
    %c0_i32_0 = arith.constant 0 : i32
    return %arg0, %c0_i32 : i32, i32
  }
}

</mosaic_0001>

<llo_original>
// kernel: tpu_custom_call.1
$region0: #{tpu_custom_call.1}
  #allocation0 [shape = 'u32[]', space=smem, size = 0x4, offset = 0x4, fixed_abs, tag = 'smem constant byte address 0x4 - core index']
  #allocation1 [shape = 'u32[144,128]{1,0:T(1,128)}', space=vmem, size = 0x12000, scoped, tag = 'internal scratch']
  %s0 = inlined_call_operand.vmem [shape: f32[8,32], index: 0, kind: input, shape index: {}]
  %s1 = inlined_call_operand.vmem [shape: bf16[32,256], index: 1, kind: input, shape index: {}]
  %s2 = inlined_call_operand.vmem [shape: f32[1,256], index: 2, kind: input, shape index: {}]
  %s3 = inlined_call_operand.hbm [shape: bf16[256,128], index: 3, kind: input, shape index: {}]
  %s4 = inlined_call_operand.vmem [shape: f32[1,128], index: 4, kind: input, shape index: {}]
  %s5 = inlined_call_operand.vmem [shape: bf16[128,64], index: 5, kind: input, shape index: {}]
  %s6 = inlined_call_operand.vmem [shape: f32[1,64], index: 6, kind: input, shape index: {}]
  %s7 = inlined_call_operand.vmem [shape: bf16[64,128], index: 7, kind: input, shape index: {}]
  %s8 = inlined_call_operand.vmem [shape: f32[1,128], index: 8, kind: input, shape index: {}]
  %s9 = inlined_call_operand.hbm [shape: f32[8,128], index: 9, kind: output, shape index: {}]
  %s10 = sld [smem:[#allocation0]]
  $region50: #{tpu_custom_call.1} parent=0
    _
  %s12 = ssub.s32 1, %s10
  %s13 = scalar_select 0, %s12, %s10
  $region1: #{tpu_custom_call.1} parent=0
    #allocation2 [shape = 'u8[65536]{0}', space=vmem, size = 0x10000, scoped, tag = 'input window, operand 3, single buffered']
    #allocation3 [shape = 's32[1]{0}', space=sflag, size = 0x4, scoped, tag = 'scoped memory for tpu_custom_call.1']
    #allocation4 [shape = 's32[1]{0}', space=sflag, size = 0x4, scoped, tag = 'scoped memory for tpu_custom_call.1']
    #allocation5 [shape = 'u8[4096]{0}', space=vmem, size = 0x1000, scoped, tag = 'output window, operand 0, single buffered']
    %14 = vsyncpa [#allocation3], 0
    %15 = vsyncpa [#allocation4], 0
    // Predicated region
    $region2: #{tpu_custom_call.1} parent=1 // pred_check
      _
    $region3: #{tpu_custom_call.1} parent=1 // pred_check_branch
      %17 = sbr.rel (0) target = $region5
    $region4: #{tpu_custom_call.1} parent=1 // pred_region
      _
    $region5: #{tpu_custom_call.1} parent=1 // pred_fallthru
      _
    // Predicated region
    $region6: #{tpu_custom_call.1} parent=1 // pred_check
      _
    $region7: #{tpu_custom_call.1} parent=1 // pred_check_branch
      %19 = sbr.rel (0) target = $region9
    $region8: #{tpu_custom_call.1} parent=1 // pred_region
      _
    $region9: #{tpu_custom_call.1} parent=1 // pred_fallthru
      _
    // Predicated region
    $region10: #{tpu_custom_call.1} parent=1 // pred_check
      _
    $region11: #{tpu_custom_call.1} parent=1 // pred_check_branch
      %21 = sbr.rel (0) target = $region13
    $region12: #{tpu_custom_call.1} parent=1 // pred_region
      _
    $region13: #{tpu_custom_call.1} parent=1 // pred_fallthru
      _
    // Predicated region
    $region14: #{tpu_custom_call.1} parent=1 // pred_check
      _
    $region15: #{tpu_custom_call.1} parent=1 // pred_check_branch
      %23 = sbr.rel (0) target = $region17
    $region16: #{tpu_custom_call.1} parent=1 // pred_region
      %s25 = ssub.s32 2048, 2048
      %26 = vsyncadd [#allocation3], %s25
      %s27 = sshll.u32 [#allocation2], 4
      %s28 = int_to_ptr.vmem [resolvable:$true] %s27
      %33 = dma.hbm_to_vmem [thread:$0]  %s3, 2048, %s28, [#allocation3], 64, 64, 4
    $region17: #{tpu_custom_call.1} parent=1 // pred_fallthru
      _
    // Predicated region
    $region18: #{tpu_custom_call.1} parent=1 // pred_check
      _
    $region19: #{tpu_custom_call.1} parent=1 // pred_check_branch
      %35 = sbr.rel (0) target = $region21
    $region20: #{tpu_custom_call.1} parent=1 // pred_region
      _
    $region21: #{tpu_custom_call.1} parent=1 // pred_fallthru
      _
    // Predicated region
    $region22: #{tpu_custom_call.1} parent=1 // pred_check
      _
    $region23: #{tpu_custom_call.1} parent=1 // pred_check_branch
      %37 = sbr.rel (0) target = $region25
    $region24: #{tpu_custom_call.1} parent=1 // pred_region
      _
    $region25: #{tpu_custom_call.1} parent=1 // pred_fallthru
      _
    // Predicated region
    $region26: #{tpu_custom_call.1} parent=1 // pred_check
      _
    $region27: #{tpu_custom_call.1} parent=1 // pred_check_branch
      %39 = sbr.rel (0) target = $region29
    $region28: #{tpu_custom_call.1} parent=1 // pred_region
      _
    $region29: #{tpu_custom_call.1} parent=1 // pred_fallthru
      _
    // Predicated region
    $region30: #{tpu_custom_call.1} parent=1 // pred_check
      _
    $region31: #{tpu_custom_call.1} parent=1 // pred_check_branch
      %41 = sbr.rel (0) target = $region33
    $region32: #{tpu_custom_call.1} parent=1 // pred_region
      _
    $region33: #{tpu_custom_call.1} parent=1 // pred_fallthru
      _
    // Predicated region
    $region34: #{tpu_custom_call.1} parent=1 // pred_check
      _
    $region35: #{tpu_custom_call.1} parent=1 // pred_check_branch
      %43 = sbr.rel (0) target = $region37
    $region36: #{tpu_custom_call.1} parent=1 // pred_region
      _
    $region37: #{tpu_custom_call.1} parent=1 // pred_fallthru
      _
    // Predicated region
    $region38: #{tpu_custom_call.1} parent=1 // pred_check
      _
    $region39: #{tpu_custom_call.1} parent=1 // pred_check_branch
      %45 = sbr.rel (0) target = $region41
    $region40: #{tpu_custom_call.1} parent=1 // pred_region
      %46 = dma.done [#allocation3], 2048
    $region41: #{tpu_custom_call.1} parent=1 // pred_fallthru
      _
    %v48 = vld [vmem:[%s0] sm:$0xff]
    %v49 = vpack.c.bf16 %v48, %v48
    %v50 = vld [vmem:[%s1] sm:$0xff]
    %v51 = vld [vmem:[%s1 + $0x8] sm:$0xff]
    %v52 = vld [vmem:[%s1 + $0x10] sm:$0xff]
    %v53 = vld [vmem:[%s1 + $0x18] sm:$0xff]
    %v54 = vld [vmem:[%s2] sm:$0x3]
    %v56 = vlaneseq
    %v57 = vshrl.u32 %v56, 7
    %v58 = vsub.s32 0, %v57
    %v59 = vrot.slane %v54, %v58
    %v60 = vlaneseq
    %v61 = vshrl.u32 %v60, 7
    %v62 = vsub.s32 1, %v61
    %v63 = vrot.slane %v54, %v62
    %v70 = vunpack.c.l.b16 %v50
    %v71 = vunpack.c.h.b16 %v50
    %v72 = vunpack.c.l.b16 %v51
    %v73 = vunpack.c.h.b16 %v51
    %v74 = vunpack.c.l.b16 %v52
    %v75 = vunpack.c.h.b16 %v52
    %v76 = vunpack.c.l.b16 %v53
    %v77 = vunpack.c.h.b16 %v53
    %v78 = vpack.c.b16 %v72, %v70
    %v79 = vpack.c.b16 %v73, %v71
    %v80 = vpack.c.b16 %v76, %v74
    %v81 = vpack.c.b16 %v77, %v75
    %vm86 = vcmask 261120
    %v88 = vsel %vm86, %v49, 0
    %90 = vmatprep.subr.bf16.mxu0 %v79
    %91 = vmatpush1.bf16.msra.mxu0 %v78
    %92 = vmatprep.subr.bf16.mxu0 %v81
    %93 = vmatpush1.bf16.msra.mxu0 %v80
    %94 = vmatprep.subr.bf16.mxu0 0
    %95 = vmatpush1.bf16.msra.mxu0 0
    %96 = vmatprep.subr.bf16.mxu0 0
    %97 = vmatpush1.bf16.msra.mxu0 0
    %98 = vmatprep.subr.bf16.mxu0 0
    %99 = vmatpush1.bf16.msra.mxu0 0
    %100 = vmatprep.subr.bf16.mxu0 0
    %101 = vmatpush1.bf16.msra.mxu0 0
    %102 = vmatprep.subr.bf16.mxu0 0
    %103 = vmatpush1.bf16.msra.mxu0 0
    %104 = vmatprep.subr.bf16.mxu0 0
    %105 = vmatpush1.bf16.msra.mxu0 0
    %106 = vmatprep.subr.bf16.mxu0 0
    %107 = vmatpush1.bf16.msra.mxu0 0
    %108 = vmatprep.subr.bf16.mxu0 0
    %109 = vmatpush1.bf16.msra.mxu0 0
    %110 = vmatprep.subr.bf16.mxu0 0
    %111 = vmatpush1.bf16.msra.mxu0 0
    %112 = vmatprep.subr.bf16.mxu0 0
    %113 = vmatpush1.bf16.msra.mxu0 0
    %114 = vmatprep.subr.bf16.mxu0 0
    %115 = vmatpush1.bf16.msra.mxu0 0
    %116 = vmatprep.subr.bf16.mxu0 0
    %117 = vmatpush1.bf16.msra.mxu0 0
    %118 = vmatprep.subr.bf16.mxu0 0
    %119 = vmatpush1.bf16.msra.mxu0 0
    %120 = vmatprep.subr.bf16.mxu0 0
    %121 = vmatpush1.bf16.msra.mxu0 0
    %122 = vmatprep.mubr.bf16.mxu0 0
    %123 = vmatmul.mubr.bf16.gmra.mrb[0].mxu0 %v88
    %v124 = vpop.f32.mrb[0].mxu0
    %v125 = vadd.f32 %v59, %v124
    %v126 = vpop.f32.mrb[0].mxu0
    %v127 = vadd.f32 %v63, %v126
    %v128 = vpop.f32.mrb[0].mxu0
    %v129 = vpop.f32.mrb[0].mxu0
    %130 = vdwg.mxu0
    %v131 = vmax.f32 %v125, 0.0
    %v132 = vmax.f32 %v127, 0.0
    %v133 = vpack.c.bf16 %v131, %v131
    %v134 = vpack.c.bf16 %v132, %v132
    %v135 = vld [vmem:[#allocation2] sm:$0xf]
    %v136 = vld [vmem:[#allocation2 + $0x4] sm:$0xf]
    %v137 = vld [vmem:[#allocation2 + $0x8] sm:$0xf]
    %v138 = vld [vmem:[#allocation2 + $0xc] sm:$0xf]
    %v139 = vld [vmem:[#allocation2 + $0x10] sm:$0xf]
    %v140 = vld [vmem:[#allocation2 + $0x14] sm:$0xf]
    %v141 = vld [vmem:[#allocation2 + $0x18] sm:$0xf]
    %v142 = vld [vmem:[#allocation2 + $0x1c] sm:$0xf]
    %v143 = vld [vmem:[#allocation2 + $0x20] sm:$0xf]
    %v144 = vld [vmem:[#allocation2 + $0x24] sm:$0xf]
    %v145 = vld [vmem:[#allocation2 + $0x28] sm:$0xf]
    %v146 = vld [vmem:[#allocation2 + $0x2c] sm:$0xf]
    %v147 = vld [vmem:[#allocation2 + $0x30] sm:$0xf]
    %v148 = vld [vmem:[#allocation2 + $0x34] sm:$0xf]
    %v149 = vld [vmem:[#allocation2 + $0x38] sm:$0xf]
    %v150 = vld [vmem:[#allocation2 + $0x3c] sm:$0xf]
    %v151 = vld [vmem:[#allocation2 + $0x40] sm:$0xf]
    %v152 = vld [vmem:[#allocation2 + $0x44] sm:$0xf]
    %v153 = vld [vmem:[#allocation2 + $0x48] sm:$0xf]
    %v154 = vld [vmem:[#allocation2 + $0x4c] sm:$0xf]
    %v155 = vld [vmem:[#allocation2 + $0x50] sm:$0xf]
    %v156 = vld [vmem:[#allocation2 + $0x54] sm:$0xf]
    %v157 = vld [vmem:[#allocation2 + $0x58] sm:$0xf]
    %v158 = vld [vmem:[#allocation2 + $0x5c] sm:$0xf]
    %v159 = vld [vmem:[#allocation2 + $0x60] sm:$0xf]
    %v160 = vld [vmem:[#allocation2 + $0x64] sm:$0xf]
    %v161 = vld [vmem:[#allocation2 + $0x68] sm:$0xf]
    %v162 = vld [vmem:[#allocation2 + $0x6c] sm:$0xf]
    %v163 = vld [vmem:[#allocation2 + $0x70] sm:$0xf]
    %v164 = vld [vmem:[#allocation2 + $0x74] sm:$0xf]
    %v165 = vld [vmem:[#allocation2 + $0x78] sm:$0xf]
    %v166 = vld [vmem:[#allocation2 + $0x7c] sm:$0xf]
    %v167 = vld [vmem:[%s4] sm:$0x1]
    %v169 = vlaneseq
    %v170 = vshrl.u32 %v169, 7
    %v171 = vsub.s32 0, %v170
    %v172 = vrot.slane %v167, %v171
    %v206 = vunpack.c.l.b16 %v135
    %v207 = vunpack.c.l.b16 %v136
    %v208 = vunpack.c.l.b16 %v137
    %v209 = vunpack.c.l.b16 %v138
    %v210 = vunpack.c.l.b16 %v139
    %v211 = vunpack.c.l.b16 %v140
    %v212 = vunpack.c.l.b16 %v141
    %v213 = vunpack.c.l.b16 %v142
    %v214 = vunpack.c.l.b16 %v143
    %v215 = vunpack.c.l.b16 %v144
    %v216 = vunpack.c.l.b16 %v145
    %v217 = vunpack.c.l.b16 %v146
    %v218 = vunpack.c.l.b16 %v147
    %v219 = vunpack.c.l.b16 %v148
    %v220 = vunpack.c.l.b16 %v149
    %v221 = vunpack.c.l.b16 %v150
    %v222 = vunpack.c.l.b16 %v151
    %v223 = vunpack.c.l.b16 %v152
    %v224 = vunpack.c.l.b16 %v153
    %v225 = vunpack.c.l.b16 %v154
    %v226 = vunpack.c.l.b16 %v155
    %v227 = vunpack.c.l.b16 %v156
    %v228 = vunpack.c.l.b16 %v157
    %v229 = vunpack.c.l.b16 %v158
    %v230 = vunpack.c.l.b16 %v159
    %v231 = vunpack.c.l.b16 %v160
    %v232 = vunpack.c.l.b16 %v161
    %v233 = vunpack.c.l.b16 %v162
    %v234 = vunpack.c.l.b16 %v163
    %v235 = vunpack.c.l.b16 %v164
    %v236 = vunpack.c.l.b16 %v165
    %v237 = vunpack.c.l.b16 %v166
    %v238 = vpack.c.b16 %v207, %v206
    %v239 = vpack.c.b16 %v209, %v208
    %v240 = vpack.c.b16 %v211, %v210
    %v241 = vpack.c.b16 %v213, %v212
    %v242 = vpack.c.b16 %v215, %v214
    %v243 = vpack.c.b16 %v217, %v216
    %v244 = vpack.c.b16 %v219, %v218
    %v245 = vpack.c.b16 %v221, %v220
    %v246 = vpack.c.b16 %v223, %v222
    %v247 = vpack.c.b16 %v225, %v224
    %v248 = vpack.c.b16 %v227, %v226
    %v249 = vpack.c.b16 %v229, %v228
    %v250 = vpack.c.b16 %v231, %v230
    %v251 = vpack.c.b16 %v233, %v232
    %v252 = vpack.c.b16 %v235, %v234
    %v253 = vpack.c.b16 %v237, %v236
    %270 = vmatprep.subr.bf16.mxu0 0
    %271 = vmatpush1.bf16.msra.mxu0 %v238
    %272 = vmatprep.subr.bf16.mxu0 0
    %273 = vmatpush1.bf16.msra.mxu0 %v239
    %274 = vmatprep.subr.bf16.mxu0 0
    %275 = vmatpush1.bf16.msra.mxu0 %v240
    %276 = vmatprep.subr.bf16.mxu0 0
    %277 = vmatpush1.bf16.msra.mxu0 %v241
    %278 = vmatprep.subr.bf16.mxu0 0
    %279 = vmatpush1.bf16.msra.mxu0 %v242
    %280 = vmatprep.subr.bf16.mxu0 0
    %281 = vmatpush1.bf16.msra.mxu0 %v243
    %282 = vmatprep.subr.bf16.mxu0 0
    %283 = vmatpush1.bf16.msra.mxu0 %v244
    %284 = vmatprep.subr.bf16.mxu0 0
    %285 = vmatpush1.bf16.msra.mxu0 %v245
    %286 = vmatprep.subr.bf16.mxu0 0
    %287 = vmatpush1.bf16.msra.mxu0 %v246
    %288 = vmatprep.subr.bf16.mxu0 0
    %289 = vmatpush1.bf16.msra.mxu0 %v247
    %290 = vmatprep.subr.bf16.mxu0 0
    %291 = vmatpush1.bf16.msra.mxu0 %v248
    %292 = vmatprep.subr.bf16.mxu0 0
    %293 = vmatpush1.bf16.msra.mxu0 %v249
    %294 = vmatprep.subr.bf16.mxu0 0
    %295 = vmatpush1.bf16.msra.mxu0 %v250
    %296 = vmatprep.subr.bf16.mxu0 0
    %297 = vmatpush1.bf16.msra.mxu0 %v251
    %298 = vmatprep.subr.bf16.mxu0 0
    %299 = vmatpush1.bf16.msra.mxu0 %v252
    %300 = vmatprep.subr.bf16.mxu0 0
    %301 = vmatpush1.bf16.msra.mxu0 %v253
    %302 = vmatprep.mubr.bf16.mxu0 %v134
    %303 = vmatmul.mubr.bf16.gmra.mrb[0].mxu0 %v133
    %v304 = vpop.f32.mrb[0].mxu0
    %v305 = vadd.f32 %v172, %v304
    %v306 = vpop.f32.mrb[0].mxu0
    %v307 = vpop.f32.mrb[0].mxu0
    %v308 = vpop.f32.mrb[0].mxu0
    %309 = vdwg.mxu0
    %v310 = vxor.u32 %v305, 2147483648
    %v311 = vmul.f32 %v310, 1.442695
    %v312 = vpow.pop %v311
    %v313 = vadd.f32 %v312, 1.0
    %v314 = vrcp.pop %v313
    %v315 = vmul.f32 1.0, %v314
    %v316 = vpack.c.bf16 %v315, %v315
    %v317 = vld [vmem:[%s5] sm:$0xf]
    %v318 = vld [vmem:[%s5 + $0x4] sm:$0xf]
    %v319 = vld [vmem:[%s5 + $0x8] sm:$0xf]
    %v320 = vld [vmem:[%s5 + $0xc] sm:$0xf]
    %v321 = vld [vmem:[%s5 + $0x10] sm:$0xf]
    %v322 = vld [vmem:[%s5 + $0x14] sm:$0xf]
    %v323 = vld [vmem:[%s5 + $0x18] sm:$0xf]
    %v324 = vld [vmem:[%s5 + $0x1c] sm:$0xf]
    %v325 = vld [vmem:[%s5 + $0x20] sm:$0xf]
    %v326 = vld [vmem:[%s5 + $0x24] sm:$0xf]
    %v327 = vld [vmem:[%s5 + $0x28] sm:$0xf]
    %v328 = vld [vmem:[%s5 + $0x2c] sm:$0xf]
    %v329 = vld [vmem:[%s5 + $0x30] sm:$0xf]
    %v330 = vld [vmem:[%s5 + $0x34] sm:$0xf]
    %v331 = vld [vmem:[%s5 + $0x38] sm:$0xf]
    %v332 = vld [vmem:[%s5 + $0x3c] sm:$0xf]
    %v333 = vld [vmem:[%s6] sm:$0x1]
    %v335 = vlaneseq
    %v336 = vshrl.u32 %v335, 7
    %v337 = vsub.s32 0, %v336
    %v338 = vrot.slane %v333, %v337
    %v356 = vunpack.c.l.b16 %v317
    %v357 = vunpack.c.l.b16 %v318
    %v358 = vunpack.c.l.b16 %v319
    %v359 = vunpack.c.l.b16 %v320
    %v360 = vunpack.c.l.b16 %v321
    %v361 = vunpack.c.l.b16 %v322
    %v362 = vunpack.c.l.b16 %v323
    %v363 = vunpack.c.l.b16 %v324
    %v364 = vunpack.c.l.b16 %v325
    %v365 = vunpack.c.l.b16 %v326
    %v366 = vunpack.c.l.b16 %v327
    %v367 = vunpack.c.l.b16 %v328
    %v368 = vunpack.c.l.b16 %v329
    %v369 = vunpack.c.l.b16 %v330
    %v370 = vunpack.c.l.b16 %v331
    %v371 = vunpack.c.l.b16 %v332
    %v372 = vpack.c.b16 %v357, %v356
    %v373 = vpack.c.b16 %v359, %v358
    %v374 = vpack.c.b16 %v361, %v360
    %v375 = vpack.c.b16 %v363, %v362
    %v376 = vpack.c.b16 %v365, %v364
    %v377 = vpack.c.b16 %v367, %v366
    %v378 = vpack.c.b16 %v369, %v368
    %v379 = vpack.c.b16 %v371, %v370
    %388 = vmatprep.subr.bf16.mxu0 0
    %389 = vmatpush1.bf16.msra.mxu0 %v372
    %390 = vmatprep.subr.bf16.mxu0 0
    %391 = vmatpush1.bf16.msra.mxu0 %v373
    %392 = vmatprep.subr.bf16.mxu0 0
    %393 = vmatpush1.bf16.msra.mxu0 %v374
    %394 = vmatprep.subr.bf16.mxu0 0
    %395 = vmatpush1.bf16.msra.mxu0 %v375
    %396 = vmatprep.subr.bf16.mxu0 0
    %397 = vmatpush1.bf16.msra.mxu0 %v376
    %398 = vmatprep.subr.bf16.mxu0 0
    %399 = vmatpush1.bf16.msra.mxu0 %v377
    %400 = vmatprep.subr.bf16.mxu0 0
    %401 = vmatpush1.bf16.msra.mxu0 %v378
    %402 = vmatprep.subr.bf16.mxu0 0
    %403 = vmatpush1.bf16.msra.mxu0 %v379
    %404 = vmatprep.subr.bf16.mxu0 0
    %405 = vmatpush1.bf16.msra.mxu0 0
    %406 = vmatprep.subr.bf16.mxu0 0
    %407 = vmatpush1.bf16.msra.mxu0 0
    %408 = vmatprep.subr.bf16.mxu0 0
    %409 = vmatpush1.bf16.msra.mxu0 0
    %410 = vmatprep.subr.bf16.mxu0 0
    %411 = vmatpush1.bf16.msra.mxu0 0
    %412 = vmatprep.subr.bf16.mxu0 0
    %413 = vmatpush1.bf16.msra.mxu0 0
    %414 = vmatprep.subr.bf16.mxu0 0
    %415 = vmatpush1.bf16.msra.mxu0 0
    %416 = vmatprep.subr.bf16.mxu0 0
    %417 = vmatpush1.bf16.msra.mxu0 0
    %418 = vmatprep.subr.bf16.mxu0 0
    %419 = vmatpush1.bf16.msra.mxu0 0
    %420 = vmatprep.mubr.bf16.mxu0 0
    %421 = vmatmul.mubr.bf16.gmra.mrb[0].mxu0 %v316
    %v422 = vpop.f32.mrb[0].mxu0
    %v423 = vadd.f32 %v338, %v422
    %v424 = vpop.f32.mrb[0].mxu0
    %v425 = vpop.f32.mrb[0].mxu0
    %v426 = vpop.f32.mrb[0].mxu0
    %427 = vdwg.mxu0
    %v428 = vxor.u32 %v423, 2147483648
    %v429 = vmul.f32 %v428, 1.442695
    %v430 = vpow.pop %v429
    %v431 = vadd.f32 %v430, 1.0
    %v432 = vrcp.pop %v431
    %v433 = vmul.f32 1.0, %v432
    %v434 = vpack.c.bf16 %v433, %v433
    %v435 = vld [vmem:[%s7] sm:$0xf]
    %v436 = vld [vmem:[%s7 + $0x4] sm:$0xf]
    %v437 = vld [vmem:[%s7 + $0x8] sm:$0xf]
    %v438 = vld [vmem:[%s7 + $0xc] sm:$0xf]
    %v439 = vld [vmem:[%s7 + $0x10] sm:$0xf]
    %v440 = vld [vmem:[%s7 + $0x14] sm:$0xf]
    %v441 = vld [vmem:[%s7 + $0x18] sm:$0xf]
    %v442 = vld [vmem:[%s7 + $0x1c] sm:$0xf]
    %v443 = vld [vmem:[%s8] sm:$0x1]
    %v445 = vlaneseq
    %v446 = vshrl.u32 %v445, 7
    %v447 = vsub.s32 0, %v446
    %v448 = vrot.slane %v443, %v447
    %v458 = vunpack.c.l.b16 %v435
    %v459 = vunpack.c.l.b16 %v436
    %v460 = vunpack.c.l.b16 %v437
    %v461 = vunpack.c.l.b16 %v438
    %v462 = vunpack.c.l.b16 %v439
    %v463 = vunpack.c.l.b16 %v440
    %v464 = vunpack.c.l.b16 %v441
    %v465 = vunpack.c.l.b16 %v442
    %v466 = vpack.c.b16 %v459, %v458
    %v467 = vpack.c.b16 %v461, %v460
    %v468 = vpack.c.b16 %v463, %v462
    %v469 = vpack.c.b16 %v465, %v464
    %vm474 = vcmask 523264
    %v476 = vsel %vm474, %v434, 0
    %478 = vmatprep.subr.bf16.mxu0 0
    %479 = vmatpush1.bf16.msra.mxu0 %v466
    %480 = vmatprep.subr.bf16.mxu0 0
    %481 = vmatpush1.bf16.msra.mxu0 %v467
    %482 = vmatprep.subr.bf16.mxu0 0
    %483 = vmatpush1.bf16.msra.mxu0 %v468
    %484 = vmatprep.subr.bf16.mxu0 0
    %485 = vmatpush1.bf16.msra.mxu0 %v469
    %486 = vmatprep.subr.bf16.mxu0 0
    %487 = vmatpush1.bf16.msra.mxu0 0
    %488 = vmatprep.subr.bf16.mxu0 0
    %489 = vmatpush1.bf16.msra.mxu0 0
    %490 = vmatprep.subr.bf16.mxu0 0
    %491 = vmatpush1.bf16.msra.mxu0 0
    %492 = vmatprep.subr.bf16.mxu0 0
    %493 = vmatpush1.bf16.msra.mxu0 0
    %494 = vmatprep.subr.bf16.mxu0 0
    %495 = vmatpush1.bf16.msra.mxu0 0
    %496 = vmatprep.subr.bf16.mxu0 0
    %497 = vmatpush1.bf16.msra.mxu0 0
    %498 = vmatprep.subr.bf16.mxu0 0
    %499 = vmatpush1.bf16.msra.mxu0 0
    %500 = vmatprep.subr.bf16.mxu0 0
    %501 = vmatpush1.bf16.msra.mxu0 0
    %502 = vmatprep.subr.bf16.mxu0 0
    %503 = vmatpush1.bf16.msra.mxu0 0
    %504 = vmatprep.subr.bf16.mxu0 0
    %505 = vmatpush1.bf16.msra.mxu0 0
    %506 = vmatprep.subr.bf16.mxu0 0
    %507 = vmatpush1.bf16.msra.mxu0 0
    %508 = vmatprep.subr.bf16.mxu0 0
    %509 = vmatpush1.bf16.msra.mxu0 0
    %510 = vmatprep.mubr.bf16.mxu0 0
    %511 = vmatmul.mubr.bf16.gmra.mrb[0].mxu0 %v476
    %v512 = vpop.f32.mrb[0].mxu0
    %v513 = vadd.f32 %v448, %v512
    %v514 = vpop.f32.mrb[0].mxu0
    %v515 = vpop.f32.mrb[0].mxu0
    %v516 = vpop.f32.mrb[0].mxu0
    %517 = vdwg.mxu0
    %v518 = vlaneseq
    %v519 = vand.u32 %v518, 127
    %vm520 = vcmp.lt.s32.totalorder %v519, 10
    %v521 = vsel %vm520, %v513, -inf
    %522 = vmax.xlane.f32.xlu0 %v521
    %v523 = vpop.xlane.xlu0 %522
    %v524 = vsub.f32 %v521, %v523
    %v525 = vmul.f32 %v524, 1.442695
    %v526 = vpow.pop %v525
    %527 = vadd.xlane.f32.xlu0 %v526
    %v528 = vpop.xlane.xlu0 %527
    %v529 = vrcp.pop %v528
    %v530 = vmul.f32 %v526, %v529
    %531 = vst [vmem:[#allocation5] sm:$0xff] %v530
    // Predicated region
    $region42: #{tpu_custom_call.1} parent=1 // pred_check
      _
    $region43: #{tpu_custom_call.1} parent=1 // pred_check_branch
      %533 = sbr.rel (0) target = $region45
    $region44: #{tpu_custom_call.1} parent=1 // pred_region
      %s535 = ssub.s32 128, 128
      %536 = vsyncadd [#allocation4], %s535
      %s538 = sshll.u32 [#allocation5], 4
      %s539 = int_to_ptr.vmem [resolvable:$true] %s538
      %541 = dma.vmem_to_hbm [thread:$0]  %s539, 128, %s9, [#allocation4]
    $region45: #{tpu_custom_call.1} parent=1 // pred_fallthru
      _
    // Predicated region
    $region46: #{tpu_custom_call.1} parent=1 // pred_check
      _
    $region47: #{tpu_custom_call.1} parent=1 // pred_check_branch
      %543 = sbr.rel (0) target = $region49
    $region48: #{tpu_custom_call.1} parent=1 // pred_region
      %544 = dma.done [#allocation4], 128
    $region49: #{tpu_custom_call.1} parent=1 // pred_fallthru
      _
    %545 = vsyncpa [#allocation3], 1
    %546 = vsyncpa [#allocation4], 1

</llo_original>
